<compile_context>
chip_gen: v7x
topology: tpu7x:2x2x1
jax: 0.10.0
libtpu: 0.0.40
codegen_flags: <defaults>
</compile_context>

<pallas_src>
import functools
import math

import jax
import jax.numpy as jnp
from jax.experimental import pallas as pl
from jax.experimental.pallas import tpu as pltpu


def _swiglu_kernel(x_ref, w1_ref, w3_ref, w2_ref, o_ref, acc_ref, *,
                   compute_dtype):
    # x_ref:  (tm, D)  original input dtype (cast in-kernel)
    # w1_ref: (D, th)  pre-transposed, compute dtype
    # w3_ref: (D, th)
    # w2_ref: (th, D)  pre-transposed, compute dtype
    # o_ref:  (tm, D)
    # acc_ref:(tm, D)  f32 accumulator across the H grid axis
    h = pl.program_id(1)

    @pl.when(h == 0)
    def _():
        acc_ref[...] = jnp.zeros_like(acc_ref)

    x = x_ref[...].astype(compute_dtype)          # VPU cast, hidden under MXU

    # Canonical (M,K) x (K,N) contractions -> native MXU lowering.
    h1 = jnp.dot(x, w1_ref[...], preferred_element_type=jnp.float32)  # (tm, th)
    h3 = jnp.dot(x, w3_ref[...], preferred_element_type=jnp.float32)  # (tm, th)

    # SiLU(h1) * h3 in f32 on VPU/EUP slots (free under the MXU work).
    gated = (h1 * jax.nn.sigmoid(h1)) * h3

    # Partial second matmul for this H tile; accumulate in f32.
    acc_ref[...] += jnp.dot(gated.astype(w2_ref.dtype), w2_ref[...],
                            preferred_element_type=jnp.float32)       # (tm, D)

    @pl.when(h == pl.num_programs(1) - 1)
    def _():
        o_ref[...] = acc_ref[...].astype(o_ref.dtype)


def _round_up(x, m):
    return ((x + m - 1) // m) * m


def _hw_info():
    """(vmem_capacity_bytes, tensorcores_per_device) with safe fallbacks."""
    kind = ""
    try:
        kind = str(jax.devices()[0].device_kind).lower()
    except Exception:
        pass
    is_v7 = "v7" in kind
    vmem = (64 << 20) if is_v7 else (128 << 20)
    try:
        vmem = int(getattr(pltpu.get_tpu_info(), "vmem_capacity_bytes", vmem))
    except Exception:
        pass
    if is_v7:
        vmem = min(vmem, 64 << 20)      # per-TC VMEM on v7x
    num_tc = 2 if is_v7 else 1
    return vmem, num_tc


def _plan_vmem_bytes(tm, th, D, xbytes, cbytes, obytes):
    return (2 * tm * D * xbytes          # x block (double-buffered)
            + 2 * 2 * D * th * cbytes    # w1, w3 blocks
            + 2 * th * D * cbytes        # w2 block
            + 2 * tm * D * obytes        # output block
            + tm * D * 4                 # f32 accumulator scratch
            + tm * D * cbytes            # in-kernel x cast
            + 3 * tm * th * 4)           # h1 / h3 / gated f32 intermediates


def _pick_tiles(M, D, H, xbytes, cbytes, obytes, budget, pref_tm, num_tc):
    tm = min(pref_tm, _round_up(M, 16))
    # On 2-TensorCore parts make sure the "parallel" M axis has >= 2 tiles.
    if num_tc >= 2 and M > 128:
        while (M + tm - 1) // tm < 2 and tm > 128:
            tm = max(128, _round_up(tm // 2, 16))
    th_cands = [c for c in (1024, 512, 256, 128) if c <= H and H % c == 0] or [H]
    while True:
        for th in th_cands:
            if _plan_vmem_bytes(tm, th, D, xbytes, cbytes, obytes) <= budget:
                return tm, th
        if tm <= 128:
            return tm, th_cands[-1]
        tm = max(128, _round_up(tm // 2, 16))


def prepare_swiglu_weights(w1, w2, w3, compute_dtype=jnp.bfloat16):
    """One-time (load-time) prep: cast to the MXU compute dtype and transpose
    to canonical (K, N) layouts.  torch layout in: w1, w3 (H, D); w2 (D, H)."""
    w1t = jnp.asarray(w1).astype(compute_dtype).T   # (D, H)
    w3t = jnp.asarray(w3).astype(compute_dtype).T   # (D, H)
    w2t = jnp.asarray(w2).astype(compute_dtype).T   # (H, D)
    return w1t, w2t, w3t


def swiglu_feedforward(x, w1t, w2t, w3t, *, tm=None, th=None,
                       compute_dtype=jnp.bfloat16):
    """x: (..., D).  w1t, w3t: (D, H); w2t: (H, D) from prepare_swiglu_weights."""
    orig_shape = x.shape
    out_dtype = x.dtype
    D = orig_shape[-1]
    M = math.prod(orig_shape[:-1])
    H = w1t.shape[1]
    assert w1t.shape == (D, H) and w3t.shape == (D, H) and w2t.shape == (H, D)

    xbytes = jnp.dtype(x.dtype).itemsize
    cbytes = jnp.dtype(compute_dtype).itemsize
    obytes = jnp.dtype(out_dtype).itemsize

    vmem_cap, num_tc = _hw_info()
    budget = int(vmem_cap * 0.78)              # headroom for Mosaic scratch
    pref_tm = 512 if vmem_cap <= (64 << 20) else 1024

    auto_tm, auto_th = _pick_tiles(M, D, H, xbytes, cbytes, obytes, budget,
                                   pref_tm, num_tc)
    tm = auto_tm if tm is None else tm
    th = auto_th if th is None else th
    assert H % th == 0, "H tile must divide the hidden dim"

    n_m_tiles = (M + tm - 1) // tm
    grid = (n_m_tiles, H // th)

    plan = _plan_vmem_bytes(tm, th, D, xbytes, cbytes, obytes)
    vmem_limit = min(budget, max(16 << 20, int(plan * 1.25) + (2 << 20)))

    cost = pl.CostEstimate(
        flops=6 * M * D * H,                         # three (M,D,H) matmuls
        transcendentals=M * H,                       # sigmoid
        bytes_accessed=(M * D * (xbytes + obytes)    # activations in/out
                        + n_m_tiles * 3 * D * H * cbytes),  # re-streamed weights
    )

    kernel = functools.partial(_swiglu_kernel, compute_dtype=compute_dtype)

    x2 = x.reshape(M, D)     # no host-side pad / cast of the activations

    out = pl.pallas_call(
        kernel,
        out_shape=jax.ShapeDtypeStruct((M, D), out_dtype),
        grid=grid,
        in_specs=[
            pl.BlockSpec((tm, D), lambda i, h: (i, 0)),   # x rows (constant over h)
            pl.BlockSpec((D, th), lambda i, h: (0, h)),   # w1^T tile, streams over H
            pl.BlockSpec((D, th), lambda i, h: (0, h)),   # w3^T tile
            pl.BlockSpec((th, D), lambda i, h: (h, 0)),   # w2^T tile
        ],
        out_specs=pl.BlockSpec((tm, D), lambda i, h: (i, 0)),
        scratch_shapes=[pltpu.VMEM((tm, D), jnp.float32)],
        compiler_params=pltpu.CompilerParams(
            dimension_semantics=("parallel", "arbitrary"),
            vmem_limit_bytes=vmem_limit,
        ),
        cost_estimate=cost,
    )(x2, w1t, w3t, w2t)

    return out.reshape(orig_shape)


def _make_hidden_dim(hidden_dim, multiple_of, ffn_dim_multiplier=None):
    hidden_dim = int(2 * hidden_dim / 3)
    if ffn_dim_multiplier is not None:
        hidden_dim = int(ffn_dim_multiplier * hidden_dim)
    return multiple_of * ((hidden_dim + multiple_of - 1) // multiple_of)


if __name__ == "__main__":
    # Module hyper-params (small, TPU-tile friendly).
    dim = 128
    hidden_dim_arg = 256
    multiple_of = 128
    H = _make_hidden_dim(hidden_dim_arg, multiple_of)   # -> 256

    batch, seq = 2, 8

    key = jax.random.PRNGKey(0)
    kx, k1, k2, k3 = jax.random.split(key, 4)

    x = jax.random.normal(kx, (batch, seq, dim), dtype=jnp.float32)
    # torch nn.Linear weight layout: (out_features, in_features)
    w1 = jax.random.normal(k1, (H, dim), dtype=jnp.float32) / math.sqrt(dim)
    w2 = jax.random.normal(k2, (dim, H), dtype=jnp.float32) / math.sqrt(H)
    w3 = jax.random.normal(k3, (H, dim), dtype=jnp.float32) / math.sqrt(dim)

    # One-time, load-time weight prep (cast + transpose off the hot path).
    w1t, w2t, w3t = prepare_swiglu_weights(w1, w2, w3)

    y = swiglu_feedforward(x, w1t, w2t, w3t)
    y = jax.block_until_ready(y)
    assert y.shape == (batch, seq, dim)
    assert y.dtype == x.dtype

    # Pure-JAX reference following the same bf16-operand / f32-accumulate path.
    xb, w1b, w2b, w3b = (a.astype(jnp.bfloat16) for a in (x, w1, w2, w3))
    h1 = jnp.dot(xb, w1b.T, preferred_element_type=jnp.float32)
    h3 = jnp.dot(xb, w3b.T, preferred_element_type=jnp.float32)
    g = (h1 * jax.nn.sigmoid(h1)) * h3
    ref = jnp.dot(g.astype(jnp.bfloat16), w2b.T,
                  preferred_element_type=jnp.float32).astype(x.dtype)
    assert jnp.allclose(y, ref, atol=2e-2, rtol=2e-2), "mismatch vs reference"

    print("KERNEL_OK")
</pallas_src>

<mosaic_0001>
module attributes {stable_mosaic.version = 11 : i64} {
  func.func @_swiglu_kernel(%arg0: i32, %arg1: i32, %arg2: memref<16x128xf32, #tpu.memory_space<vmem>>, %arg3: memref<128x256xbf16, #tpu.memory_space<vmem>>, %arg4: memref<128x256xbf16, #tpu.memory_space<vmem>>, %arg5: memref<256x128xbf16, #tpu.memory_space<vmem>>, %arg6: memref<16x128xf32, #tpu.memory_space<vmem>>, %arg7: memref<16x128xf32, #tpu.memory_space<vmem>>) attributes {dimension_semantics = [#tpu.dimension_semantics<parallel>, #tpu.dimension_semantics<arbitrary>], iteration_bounds = array<i64: 1, 1>, scalar_prefetch = 0 : i64, scratch_operands = 1 : i64, tpu.core_type = #tpu.core_type<tc>, window_params = [{transform_indices = @transform_0, window_bounds = array<i64: 16, 128>}, {transform_indices = @transform_1, window_bounds = array<i64: 128, 256>}, {transform_indices = @transform_2, window_bounds = array<i64: 128, 256>}, {transform_indices = @transform_3, window_bounds = array<i64: 256, 128>}, {transform_indices = @transform_4, window_bounds = array<i64: 16, 128>}]} {
    %c0_i32 = arith.constant 0 : i32
    %0 = arith.cmpi eq, %arg1, %c0_i32 : i32
    %1 = arith.extui %0 : i1 to i32
    %c0_i32_0 = arith.constant 0 : i32
    %2 = arith.cmpi ne, %1, %c0_i32_0 : i32
    scf.if %2 {
      %cst_17 = arith.constant 0.000000e+00 : f32
      %25 = vector.broadcast %cst_17 : f32 to vector<16x128xf32>
      %c0_18 = arith.constant 0 : index
      %c0_19 = arith.constant 0 : index
      %26 = vector.load %arg7[%c0_18, %c0_19] : memref<16x128xf32, #tpu.memory_space<vmem>>, vector<16x128xf32>
      tpu.vector_store %arg7[%c0_18, %c0_19], %25 {strides = array<i32>} : memref<16x128xf32, #tpu.memory_space<vmem>>, vector<16x128xf32>,
    } else {
    }
    %c0 = arith.constant 0 : index
    %c0_1 = arith.constant 0 : index
    %3 = vector.load %arg2[%c0, %c0_1] : memref<16x128xf32, #tpu.memory_space<vmem>>, vector<16x128xf32>
    %4 = arith.truncf %3 : vector<16x128xf32> to vector<16x128xbf16>
    %c0_2 = arith.constant 0 : index
    %c0_3 = arith.constant 0 : index
    %5 = vector.load %arg3[%c0_2, %c0_3] : memref<128x256xbf16, #tpu.memory_space<vmem>>, vector<128x256xbf16>
    %cst = arith.constant dense<0.000000e+00> : vector<16x256xf32>
    %6 = tpu.matmul %4, %5, %cst {dimension_numbers = #tpu.dot_dimension_numbers<[1], [0], [0], [1], [0, 0, 1, 1], [], []>} : vector<16x128xbf16>, vector<128x256xbf16>, vector<16x256xf32> -> vector<16x256xf32>
    %c0_4 = arith.constant 0 : index
    %c0_5 = arith.constant 0 : index
    %7 = vector.load %arg4[%c0_4, %c0_5] : memref<128x256xbf16, #tpu.memory_space<vmem>>, vector<128x256xbf16>
    %cst_6 = arith.constant dense<0.000000e+00> : vector<16x256xf32>
    %8 = tpu.matmul %4, %7, %cst_6 {dimension_numbers = #tpu.dot_dimension_numbers<[1], [0], [0], [1], [0, 0, 1, 1], [], []>} : vector<16x128xbf16>, vector<128x256xbf16>, vector<16x256xf32> -> vector<16x256xf32>
    %9 = arith.negf %6 : vector<16x256xf32>
    %10 = math.exp %9 : vector<16x256xf32>
    %cst_7 = arith.constant 1.000000e+00 : f32
    %11 = vector.broadcast %cst_7 : f32 to vector<16x256xf32>
    %12 = arith.addf %11, %10 : vector<16x256xf32>
    %13 = arith.divf %11, %12 : vector<16x256xf32>
    %14 = arith.mulf %6, %13 : vector<16x256xf32>
    %15 = arith.mulf %14, %8 : vector<16x256xf32>
    %c0_8 = arith.constant 0 : index
    %c0_9 = arith.constant 0 : index
    %16 = vector.load %arg7[%c0_8, %c0_9] : memref<16x128xf32, #tpu.memory_space<vmem>>, vector<16x128xf32>
    %17 = arith.truncf %15 : vector<16x256xf32> to vector<16x256xbf16>
    %c0_10 = arith.constant 0 : index
    %c0_11 = arith.constant 0 : index
    %18 = vector.load %arg5[%c0_10, %c0_11] : memref<256x128xbf16, #tpu.memory_space<vmem>>, vector<256x128xbf16>
    %cst_12 = arith.constant dense<0.000000e+00> : vector<16x128xf32>
    %19 = tpu.matmul %17, %18, %cst_12 {dimension_numbers = #tpu.dot_dimension_numbers<[1], [0], [0], [1], [0, 0, 1, 1], [], []>} : vector<16x256xbf16>, vector<256x128xbf16>, vector<16x128xf32> -> vector<16x128xf32>
    %20 = arith.addf %16, %19 : vector<16x128xf32>
    %c0_13 = arith.constant 0 : index
    %c0_14 = arith.constant 0 : index
    %21 = vector.load %arg7[%c0_13, %c0_14] : memref<16x128xf32, #tpu.memory_space<vmem>>, vector<16x128xf32>
    tpu.vector_store %arg7[%c0_13, %c0_14], %20 {strides = array<i32>} : memref<16x128xf32, #tpu.memory_space<vmem>>, vector<16x128xf32>,
    %c0_i32_15 = arith.constant 0 : i32
    %22 = arith.cmpi eq, %arg1, %c0_i32_15 : i32
    %23 = arith.extui %22 : i1 to i32
    %c0_i32_16 = arith.constant 0 : i32
    %24 = arith.cmpi ne, %23, %c0_i32_16 : i32
    scf.if %24 {
      %c0_17 = arith.constant 0 : index
      %c0_18 = arith.constant 0 : index
      %25 = vector.load %arg7[%c0_17, %c0_18] : memref<16x128xf32, #tpu.memory_space<vmem>>, vector<16x128xf32>
      %c0_19 = arith.constant 0 : index
      %c0_20 = arith.constant 0 : index
      %26 = vector.load %arg6[%c0_19, %c0_20] : memref<16x128xf32, #tpu.memory_space<vmem>>, vector<16x128xf32>
      tpu.vector_store %arg6[%c0_19, %c0_20], %25 {strides = array<i32>} : memref<16x128xf32, #tpu.memory_space<vmem>>, vector<16x128xf32>,
    } else {
    }
    return
  }
  func.func @transform_0(%arg0: i32, %arg1: i32) -> (i32, i32) {
    %c0_i32 = arith.constant 0 : i32
    %c0_i32_0 = arith.constant 0 : i32
    return %arg0, %c0_i32 : i32, i32
  }
  func.func @transform_1(%arg0: i32, %arg1: i32) -> (i32, i32) {
    %c0_i32 = arith.constant 0 : i32
    %c0_i32_0 = arith.constant 0 : i32
    return %c0_i32, %arg1 : i32, i32
  }
  func.func @transform_2(%arg0: i32, %arg1: i32) -> (i32, i32) {
    %c0_i32 = arith.constant 0 : i32
    %c0_i32_0 = arith.constant 0 : i32
    return %c0_i32, %arg1 : i32, i32
  }
  func.func @transform_3(%arg0: i32, %arg1: i32) -> (i32, i32) {
    %c0_i32 = arith.constant 0 : i32
    %c0_i32_0 = arith.constant 0 : i32
    return %arg1, %c0_i32 : i32, i32
  }
  func.func @transform_4(%arg0: i32, %arg1: i32) -> (i32, i32) {
    %c0_i32 = arith.constant 0 : i32
    %c0_i32_0 = arith.constant 0 : i32
    return %arg0, %c0_i32 : i32, i32
  }
}

</mosaic_0001>

<llo_original>
// kernel: tpu_custom_call.1
$region0: #{tpu_custom_call.1}
  #allocation0 [shape = 'u32[]', space=smem, size = 0x4, offset = 0x4, fixed_abs, tag = 'smem constant byte address 0x4 - core index']
  #allocation1 [shape = 'u32[144,128]{1,0:T(1,128)}', space=vmem, size = 0x12000, scoped, tag = 'internal scratch']
  #allocation2 [shape = 'f32[16,128]{1,0:T(8,128)}', space=vmem, size = 0x2000, scoped, tag = 'scratch operand']
  %s0 = inlined_call_operand.hbm [shape: f32[16,128], index: 0, kind: input, shape index: {}]
  %s1 = inlined_call_operand.hbm [shape: bf16[128,256], index: 1, kind: input, shape index: {}]
  %s2 = inlined_call_operand.hbm [shape: bf16[128,256], index: 2, kind: input, shape index: {}]
  %s3 = inlined_call_operand.hbm [shape: bf16[256,128], index: 3, kind: input, shape index: {}]
  %s4 = inlined_call_operand.hbm [shape: f32[16,128], index: 4, kind: output, shape index: {}]
  %s5 = sld [smem:[#allocation0]]
  $region50: #{tpu_custom_call.1} parent=0
    _
  %s7 = ssub.s32 1, %s5
  %s8 = scalar_select 0, %s7, %s5
  $region1: #{tpu_custom_call.1} parent=0
    #allocation3 [shape = 'u8[8192]{0}', space=vmem, size = 0x2000, scoped, tag = 'input window, operand 0, single buffered']
    #allocation4 [shape = 's32[1]{0}', space=sflag, size = 0x4, scoped, tag = 'scoped memory for tpu_custom_call.1']
    #allocation5 [shape = 's32[1]{0}', space=sflag, size = 0x4, scoped, tag = 'scoped memory for tpu_custom_call.1']
    #allocation6 [shape = 'u8[65536]{0}', space=vmem, size = 0x10000, scoped, tag = 'input window, operand 1, single buffered']
    #allocation7 [shape = 's32[1]{0}', space=sflag, size = 0x4, scoped, tag = 'scoped memory for tpu_custom_call.1']
    #allocation8 [shape = 'u8[65536]{0}', space=vmem, size = 0x10000, scoped, tag = 'input window, operand 2, single buffered']
    #allocation9 [shape = 'u8[65536]{0}', space=vmem, size = 0x10000, scoped, tag = 'input window, operand 3, single buffered']
    #allocation10 [shape = 's32[1]{0}', space=sflag, size = 0x4, scoped, tag = 'scoped memory for tpu_custom_call.1']
    #allocation11 [shape = 'u8[8192]{0}', space=vmem, size = 0x2000, scoped, tag = 'output window, operand 0, single buffered']
    %9 = vsyncpa [#allocation4], 0
    %10 = vsyncpa [#allocation7], 0
    %11 = vsyncpa [#allocation10], 0
    %12 = vsyncpa [#allocation5], 0
    // Predicated region
    $region2: #{tpu_custom_call.1} parent=1 // pred_check
      _
    $region3: #{tpu_custom_call.1} parent=1 // pred_check_branch
      %14 = sbr.rel (0) target = $region5
    $region4: #{tpu_custom_call.1} parent=1 // pred_region
      %s16 = ssub.s32 256, 256
      %17 = vsyncadd [#allocation4], %s16
      %s18 = sshll.u32 [#allocation3], 4
      %s19 = int_to_ptr.vmem [resolvable:$true] %s18
      %24 = dma.hbm_to_vmem [thread:$0]  %s0, 256, %s19, [#allocation4], 128, 128, 8
    $region5: #{tpu_custom_call.1} parent=1 // pred_fallthru
      _
    // Predicated region
    $region6: #{tpu_custom_call.1} parent=1 // pred_check
      _
    $region7: #{tpu_custom_call.1} parent=1 // pred_check_branch
      %26 = sbr.rel (0) target = $region9
    $region8: #{tpu_custom_call.1} parent=1 // pred_region
      %s28 = ssub.s32 2048, 2048
      %29 = vsyncadd [#allocation7], %s28
      %s30 = sshll.u32 [#allocation6], 4
      %s31 = int_to_ptr.vmem [resolvable:$true] %s30
      %36 = dma.hbm_to_vmem [thread:$0]  %s1, 2048, %s31, [#allocation7], 128, 128, 8
    $region9: #{tpu_custom_call.1} parent=1 // pred_fallthru
      _
    // Predicated region
    $region10: #{tpu_custom_call.1} parent=1 // pred_check
      _
    $region11: #{tpu_custom_call.1} parent=1 // pred_check_branch
      %38 = sbr.rel (0) target = $region13
    $region12: #{tpu_custom_call.1} parent=1 // pred_region
      %s40 = ssub.s32 2048, 2048
      %41 = vsyncadd [#allocation7], %s40
      %s42 = sshll.u32 [#allocation8], 4
      %s43 = int_to_ptr.vmem [resolvable:$true] %s42
      %48 = dma.hbm_to_vmem [thread:$0]  %s2, 2048, %s43, [#allocation7], 128, 128, 8
    $region13: #{tpu_custom_call.1} parent=1 // pred_fallthru
      _
    // Predicated region
    $region14: #{tpu_custom_call.1} parent=1 // pred_check
      _
    $region15: #{tpu_custom_call.1} parent=1 // pred_check_branch
      %50 = sbr.rel (0) target = $region17
    $region16: #{tpu_custom_call.1} parent=1 // pred_region
      %s52 = ssub.s32 2048, 2048
      %53 = vsyncadd [#allocation10], %s52
      %s54 = sshll.u32 [#allocation9], 4
      %s55 = int_to_ptr.vmem [resolvable:$true] %s54
      %60 = dma.hbm_to_vmem [thread:$0]  %s3, 2048, %s55, [#allocation10], 64, 64, 4
    $region17: #{tpu_custom_call.1} parent=1 // pred_fallthru
      _
    // Predicated region
    $region18: #{tpu_custom_call.1} parent=1 // pred_check
      _
    $region19: #{tpu_custom_call.1} parent=1 // pred_check_branch
      %62 = sbr.rel (0) target = $region21
    $region20: #{tpu_custom_call.1} parent=1 // pred_region
      %63 = dma.done [#allocation4], 256
    $region21: #{tpu_custom_call.1} parent=1 // pred_fallthru
      _
    // Predicated region
    $region22: #{tpu_custom_call.1} parent=1 // pred_check
      _
    $region23: #{tpu_custom_call.1} parent=1 // pred_check_branch
      %65 = sbr.rel (0) target = $region25
    $region24: #{tpu_custom_call.1} parent=1 // pred_region
      %66 = dma.done [#allocation7], 2048
    $region25: #{tpu_custom_call.1} parent=1 // pred_fallthru
      _
    // Predicated region
    $region26: #{tpu_custom_call.1} parent=1 // pred_check
      _
    $region27: #{tpu_custom_call.1} parent=1 // pred_check_branch
      %68 = sbr.rel (0) target = $region29
    $region28: #{tpu_custom_call.1} parent=1 // pred_region
      %69 = dma.done [#allocation7], 2048
    $region29: #{tpu_custom_call.1} parent=1 // pred_fallthru
      _
    // Predicated region
    $region30: #{tpu_custom_call.1} parent=1 // pred_check
      _
    $region31: #{tpu_custom_call.1} parent=1 // pred_check_branch
      %71 = sbr.rel (0) target = $region33
    $region32: #{tpu_custom_call.1} parent=1 // pred_region
      %72 = dma.done [#allocation10], 2048
    $region33: #{tpu_custom_call.1} parent=1 // pred_fallthru
      _
    %p74 = scmp.eq.s32.totalorder 0, 0
    // Predicated region
    $region34: #{tpu_custom_call.1} parent=1 // pred_check
      %p75 = pneg %p74
    $region35: #{tpu_custom_call.1} parent=1 // pred_check_branch
      %77 = sbr.rel (%p75) target = $region37
    $region36: #{tpu_custom_call.1} parent=1 // pred_region
      %78 = vst [vmem:[#allocation2] sm:$0xff] 0.0
      %79 = vst [vmem:[#allocation2 + $0x8] sm:$0xff] 0.0
    $region37: #{tpu_custom_call.1} parent=1 // pred_fallthru
      _
    %v80 = vld [vmem:[#allocation3] sm:$0xff]
    %v81 = vld [vmem:[#allocation3 + $0x8] sm:$0xff]
    %v82 = vpack.c.bf16 %v81, %v80
    %v83 = vld [vmem:[#allocation6] sm:$0xff]
    %v84 = vld [vmem:[#allocation6 + $0x8] sm:$0xff]
    %v85 = vld [vmem:[#allocation6 + $0x10] sm:$0xff]
    %v86 = vld [vmem:[#allocation6 + $0x18] sm:$0xff]
    %v87 = vld [vmem:[#allocation6 + $0x20] sm:$0xff]
    %v88 = vld [vmem:[#allocation6 + $0x28] sm:$0xff]
    %v89 = vld [vmem:[#allocation6 + $0x30] sm:$0xff]
    %v90 = vld [vmem:[#allocation6 + $0x38] sm:$0xff]
    %v91 = vld [vmem:[#allocation6 + $0x40] sm:$0xff]
    %v92 = vld [vmem:[#allocation6 + $0x48] sm:$0xff]
    %v93 = vld [vmem:[#allocation6 + $0x50] sm:$0xff]
    %v94 = vld [vmem:[#allocation6 + $0x58] sm:$0xff]
    %v95 = vld [vmem:[#allocation6 + $0x60] sm:$0xff]
    %v96 = vld [vmem:[#allocation6 + $0x68] sm:$0xff]
    %v97 = vld [vmem:[#allocation6 + $0x70] sm:$0xff]
    %v98 = vld [vmem:[#allocation6 + $0x78] sm:$0xff]
    %v115 = vunpack.c.l.b16 %v83
    %v116 = vunpack.c.h.b16 %v83
    %v117 = vunpack.c.l.b16 %v84
    %v118 = vunpack.c.h.b16 %v84
    %v119 = vunpack.c.l.b16 %v85
    %v120 = vunpack.c.h.b16 %v85
    %v121 = vunpack.c.l.b16 %v86
    %v122 = vunpack.c.h.b16 %v86
    %v123 = vunpack.c.l.b16 %v87
    %v124 = vunpack.c.h.b16 %v87
    %v125 = vunpack.c.l.b16 %v88
    %v126 = vunpack.c.h.b16 %v88
    %v127 = vunpack.c.l.b16 %v89
    %v128 = vunpack.c.h.b16 %v89
    %v129 = vunpack.c.l.b16 %v90
    %v130 = vunpack.c.h.b16 %v90
    %v131 = vunpack.c.l.b16 %v91
    %v132 = vunpack.c.h.b16 %v91
    %v133 = vunpack.c.l.b16 %v92
    %v134 = vunpack.c.h.b16 %v92
    %v135 = vunpack.c.l.b16 %v93
    %v136 = vunpack.c.h.b16 %v93
    %v137 = vunpack.c.l.b16 %v94
    %v138 = vunpack.c.h.b16 %v94
    %v139 = vunpack.c.l.b16 %v95
    %v140 = vunpack.c.h.b16 %v95
    %v141 = vunpack.c.l.b16 %v96
    %v142 = vunpack.c.h.b16 %v96
    %v143 = vunpack.c.l.b16 %v97
    %v144 = vunpack.c.h.b16 %v97
    %v145 = vunpack.c.l.b16 %v98
    %v146 = vunpack.c.h.b16 %v98
    %v147 = vpack.c.b16 %v117, %v115
    %v148 = vpack.c.b16 %v118, %v116
    %v149 = vpack.c.b16 %v121, %v119
    %v150 = vpack.c.b16 %v122, %v120
    %v151 = vpack.c.b16 %v125, %v123
    %v152 = vpack.c.b16 %v126, %v124
    %v153 = vpack.c.b16 %v129, %v127
    %v154 = vpack.c.b16 %v130, %v128
    %v155 = vpack.c.b16 %v133, %v131
    %v156 = vpack.c.b16 %v134, %v132
    %v157 = vpack.c.b16 %v137, %v135
    %v158 = vpack.c.b16 %v138, %v136
    %v159 = vpack.c.b16 %v141, %v139
    %v160 = vpack.c.b16 %v142, %v140
    %v161 = vpack.c.b16 %v145, %v143
    %v162 = vpack.c.b16 %v146, %v144
    %179 = vmatprep.subr.bf16.mxu0 %v148
    %180 = vmatpush1.bf16.msra.mxu0 %v147
    %181 = vmatprep.subr.bf16.mxu0 %v150
    %182 = vmatpush1.bf16.msra.mxu0 %v149
    %183 = vmatprep.subr.bf16.mxu0 %v152
    %184 = vmatpush1.bf16.msra.mxu0 %v151
    %185 = vmatprep.subr.bf16.mxu0 %v154
    %186 = vmatpush1.bf16.msra.mxu0 %v153
    %187 = vmatprep.subr.bf16.mxu0 %v156
    %188 = vmatpush1.bf16.msra.mxu0 %v155
    %189 = vmatprep.subr.bf16.mxu0 %v158
    %190 = vmatpush1.bf16.msra.mxu0 %v157
    %191 = vmatprep.subr.bf16.mxu0 %v160
    %192 = vmatpush1.bf16.msra.mxu0 %v159
    %193 = vmatprep.subr.bf16.mxu0 %v162
    %194 = vmatpush1.bf16.msra.mxu0 %v161
    %195 = vmatprep.subr.bf16.mxu0 0
    %196 = vmatpush1.bf16.msra.mxu0 0
    %197 = vmatprep.subr.bf16.mxu0 0
    %198 = vmatpush1.bf16.msra.mxu0 0
    %199 = vmatprep.subr.bf16.mxu0 0
    %200 = vmatpush1.bf16.msra.mxu0 0
    %201 = vmatprep.subr.bf16.mxu0 0
    %202 = vmatpush1.bf16.msra.mxu0 0
    %203 = vmatprep.subr.bf16.mxu0 0
    %204 = vmatpush1.bf16.msra.mxu0 0
    %205 = vmatprep.subr.bf16.mxu0 0
    %206 = vmatpush1.bf16.msra.mxu0 0
    %207 = vmatprep.subr.bf16.mxu0 0
    %208 = vmatpush1.bf16.msra.mxu0 0
    %209 = vmatprep.subr.bf16.mxu0 0
    %210 = vmatpush1.bf16.msra.mxu0 0
    %211 = vmatprep.mubr.bf16.mxu0 0
    %212 = vmatmul.mubr.bf16.gmra.mrb[0].mxu0 %v82
    %v213 = vpop.f32.mrb[0].mxu0
    %v214 = vadd.f32 0.0, %v213
    %v215 = vpop.f32.mrb[0].mxu0
    %v216 = vadd.f32 0.0, %v215
    %v217 = vpop.f32.mrb[0].mxu0
    %v218 = vadd.f32 0.0, %v217
    %v219 = vpop.f32.mrb[0].mxu0
    %v220 = vadd.f32 0.0, %v219
    %221 = vdwg.mxu0
    %v222 = vld [vmem:[#allocation8] sm:$0xff]
    %v223 = vld [vmem:[#allocation8 + $0x8] sm:$0xff]
    %v224 = vld [vmem:[#allocation8 + $0x10] sm:$0xff]
    %v225 = vld [vmem:[#allocation8 + $0x18] sm:$0xff]
    %v226 = vld [vmem:[#allocation8 + $0x20] sm:$0xff]
    %v227 = vld [vmem:[#allocation8 + $0x28] sm:$0xff]
    %v228 = vld [vmem:[#allocation8 + $0x30] sm:$0xff]
    %v229 = vld [vmem:[#allocation8 + $0x38] sm:$0xff]
    %v230 = vld [vmem:[#allocation8 + $0x40] sm:$0xff]
    %v231 = vld [vmem:[#allocation8 + $0x48] sm:$0xff]
    %v232 = vld [vmem:[#allocation8 + $0x50] sm:$0xff]
    %v233 = vld [vmem:[#allocation8 + $0x58] sm:$0xff]
    %v234 = vld [vmem:[#allocation8 + $0x60] sm:$0xff]
    %v235 = vld [vmem:[#allocation8 + $0x68] sm:$0xff]
    %v236 = vld [vmem:[#allocation8 + $0x70] sm:$0xff]
    %v237 = vld [vmem:[#allocation8 + $0x78] sm:$0xff]
    %v254 = vunpack.c.l.b16 %v222
    %v255 = vunpack.c.h.b16 %v222
    %v256 = vunpack.c.l.b16 %v223
    %v257 = vunpack.c.h.b16 %v223
    %v258 = vunpack.c.l.b16 %v224
    %v259 = vunpack.c.h.b16 %v224
    %v260 = vunpack.c.l.b16 %v225
    %v261 = vunpack.c.h.b16 %v225
    %v262 = vunpack.c.l.b16 %v226
    %v263 = vunpack.c.h.b16 %v226
    %v264 = vunpack.c.l.b16 %v227
    %v265 = vunpack.c.h.b16 %v227
    %v266 = vunpack.c.l.b16 %v228
    %v267 = vunpack.c.h.b16 %v228
    %v268 = vunpack.c.l.b16 %v229
    %v269 = vunpack.c.h.b16 %v229
    %v270 = vunpack.c.l.b16 %v230
    %v271 = vunpack.c.h.b16 %v230
    %v272 = vunpack.c.l.b16 %v231
    %v273 = vunpack.c.h.b16 %v231
    %v274 = vunpack.c.l.b16 %v232
    %v275 = vunpack.c.h.b16 %v232
    %v276 = vunpack.c.l.b16 %v233
    %v277 = vunpack.c.h.b16 %v233
    %v278 = vunpack.c.l.b16 %v234
    %v279 = vunpack.c.h.b16 %v234
    %v280 = vunpack.c.l.b16 %v235
    %v281 = vunpack.c.h.b16 %v235
    %v282 = vunpack.c.l.b16 %v236
    %v283 = vunpack.c.h.b16 %v236
    %v284 = vunpack.c.l.b16 %v237
    %v285 = vunpack.c.h.b16 %v237
    %v286 = vpack.c.b16 %v256, %v254
    %v287 = vpack.c.b16 %v257, %v255
    %v288 = vpack.c.b16 %v260, %v258
    %v289 = vpack.c.b16 %v261, %v259
    %v290 = vpack.c.b16 %v264, %v262
    %v291 = vpack.c.b16 %v265, %v263
    %v292 = vpack.c.b16 %v268, %v266
    %v293 = vpack.c.b16 %v269, %v267
    %v294 = vpack.c.b16 %v272, %v270
    %v295 = vpack.c.b16 %v273, %v271
    %v296 = vpack.c.b16 %v276, %v274
    %v297 = vpack.c.b16 %v277, %v275
    %v298 = vpack.c.b16 %v280, %v278
    %v299 = vpack.c.b16 %v281, %v279
    %v300 = vpack.c.b16 %v284, %v282
    %v301 = vpack.c.b16 %v285, %v283
    %318 = vmatprep.subr.bf16.mxu0 %v287
    %319 = vmatpush1.bf16.msra.mxu0 %v286
    %320 = vmatprep.subr.bf16.mxu0 %v289
    %321 = vmatpush1.bf16.msra.mxu0 %v288
    %322 = vmatprep.subr.bf16.mxu0 %v291
    %323 = vmatpush1.bf16.msra.mxu0 %v290
    %324 = vmatprep.subr.bf16.mxu0 %v293
    %325 = vmatpush1.bf16.msra.mxu0 %v292
    %326 = vmatprep.subr.bf16.mxu0 %v295
    %327 = vmatpush1.bf16.msra.mxu0 %v294
    %328 = vmatprep.subr.bf16.mxu0 %v297
    %329 = vmatpush1.bf16.msra.mxu0 %v296
    %330 = vmatprep.subr.bf16.mxu0 %v299
    %331 = vmatpush1.bf16.msra.mxu0 %v298
    %332 = vmatprep.subr.bf16.mxu0 %v301
    %333 = vmatpush1.bf16.msra.mxu0 %v300
    %334 = vmatprep.subr.bf16.mxu0 0
    %335 = vmatpush1.bf16.msra.mxu0 0
    %336 = vmatprep.subr.bf16.mxu0 0
    %337 = vmatpush1.bf16.msra.mxu0 0
    %338 = vmatprep.subr.bf16.mxu0 0
    %339 = vmatpush1.bf16.msra.mxu0 0
    %340 = vmatprep.subr.bf16.mxu0 0
    %341 = vmatpush1.bf16.msra.mxu0 0
    %342 = vmatprep.subr.bf16.mxu0 0
    %343 = vmatpush1.bf16.msra.mxu0 0
    %344 = vmatprep.subr.bf16.mxu0 0
    %345 = vmatpush1.bf16.msra.mxu0 0
    %346 = vmatprep.subr.bf16.mxu0 0
    %347 = vmatpush1.bf16.msra.mxu0 0
    %348 = vmatprep.subr.bf16.mxu0 0
    %349 = vmatpush1.bf16.msra.mxu0 0
    %350 = vmatprep.mubr.bf16.mxu0 0
    %351 = vmatmul.mubr.bf16.gmra.mrb[0].mxu0 %v82
    %v352 = vpop.f32.mrb[0].mxu0
    %v353 = vadd.f32 0.0, %v352
    %v354 = vpop.f32.mrb[0].mxu0
    %v355 = vadd.f32 0.0, %v354
    %v356 = vpop.f32.mrb[0].mxu0
    %v357 = vadd.f32 0.0, %v356
    %v358 = vpop.f32.mrb[0].mxu0
    %v359 = vadd.f32 0.0, %v358
    %360 = vdwg.mxu0
    %v361 = vxor.u32 %v214, 2147483648
    %v362 = vxor.u32 %v216, 2147483648
    %v363 = vxor.u32 %v218, 2147483648
    %v364 = vxor.u32 %v220, 2147483648
    %v365 = vmul.f32 %v361, 1.442695
    %v366 = vpow.pop %v365
    %v367 = vmul.f32 %v362, 1.442695
    %v368 = vpow.pop %v367
    %v369 = vmul.f32 %v363, 1.442695
    %v370 = vpow.pop %v369
    %v371 = vmul.f32 %v364, 1.442695
    %v372 = vpow.pop %v371
    %v373 = vadd.f32 %v366, 1.0
    %v374 = vadd.f32 %v368, 1.0
    %v375 = vadd.f32 %v370, 1.0
    %v376 = vadd.f32 %v372, 1.0
    %v377 = vrcp.pop %v373
    %v378 = vmul.f32 1.0, %v377
    %v379 = vrcp.pop %v374
    %v380 = vmul.f32 1.0, %v379
    %v381 = vrcp.pop %v375
    %v382 = vmul.f32 1.0, %v381
    %v383 = vrcp.pop %v376
    %v384 = vmul.f32 1.0, %v383
    %v385 = vmul.f32 %v214, %v378
    %v386 = vmul.f32 %v216, %v380
    %v387 = vmul.f32 %v218, %v382
    %v388 = vmul.f32 %v220, %v384
    %v389 = vmul.f32 %v385, %v353
    %v390 = vmul.f32 %v386, %v355
    %v391 = vmul.f32 %v387, %v357
    %v392 = vmul.f32 %v388, %v359
    %v393 = vld [vmem:[#allocation2] sm:$0xff]
    %v394 = vld [vmem:[#allocation2 + $0x8] sm:$0xff]
    %v395 = vpack.c.bf16 %v391, %v389
    %v396 = vpack.c.bf16 %v392, %v390
    %v397 = vld [vmem:[#allocation9] sm:$0xf]
    %v398 = vld [vmem:[#allocation9 + $0x4] sm:$0xf]
    %v399 = vld [vmem:[#allocation9 + $0x8] sm:$0xf]
    %v400 = vld [vmem:[#allocation9 + $0xc] sm:$0xf]
    %v401 = vld [vmem:[#allocation9 + $0x10] sm:$0xf]
    %v402 = vld [vmem:[#allocation9 + $0x14] sm:$0xf]
    %v403 = vld [vmem:[#allocation9 + $0x18] sm:$0xf]
    %v404 = vld [vmem:[#allocation9 + $0x1c] sm:$0xf]
    %v405 = vld [vmem:[#allocation9 + $0x20] sm:$0xf]
    %v406 = vld [vmem:[#allocation9 + $0x24] sm:$0xf]
    %v407 = vld [vmem:[#allocation9 + $0x28] sm:$0xf]
    %v408 = vld [vmem:[#allocation9 + $0x2c] sm:$0xf]
    %v409 = vld [vmem:[#allocation9 + $0x30] sm:$0xf]
    %v410 = vld [vmem:[#allocation9 + $0x34] sm:$0xf]
    %v411 = vld [vmem:[#allocation9 + $0x38] sm:$0xf]
    %v412 = vld [vmem:[#allocation9 + $0x3c] sm:$0xf]
    %v413 = vld [vmem:[#allocation9 + $0x40] sm:$0xf]
    %v414 = vld [vmem:[#allocation9 + $0x44] sm:$0xf]
    %v415 = vld [vmem:[#allocation9 + $0x48] sm:$0xf]
    %v416 = vld [vmem:[#allocation9 + $0x4c] sm:$0xf]
    %v417 = vld [vmem:[#allocation9 + $0x50] sm:$0xf]
    %v418 = vld [vmem:[#allocation9 + $0x54] sm:$0xf]
    %v419 = vld [vmem:[#allocation9 + $0x58] sm:$0xf]
    %v420 = vld [vmem:[#allocation9 + $0x5c] sm:$0xf]
    %v421 = vld [vmem:[#allocation9 + $0x60] sm:$0xf]
    %v422 = vld [vmem:[#allocation9 + $0x64] sm:$0xf]
    %v423 = vld [vmem:[#allocation9 + $0x68] sm:$0xf]
    %v424 = vld [vmem:[#allocation9 + $0x6c] sm:$0xf]
    %v425 = vld [vmem:[#allocation9 + $0x70] sm:$0xf]
    %v426 = vld [vmem:[#allocation9 + $0x74] sm:$0xf]
    %v427 = vld [vmem:[#allocation9 + $0x78] sm:$0xf]
    %v428 = vld [vmem:[#allocation9 + $0x7c] sm:$0xf]
    %v461 = vunpack.c.l.b16 %v397
    %v462 = vunpack.c.l.b16 %v398
    %v463 = vunpack.c.l.b16 %v399
    %v464 = vunpack.c.l.b16 %v400
    %v465 = vunpack.c.l.b16 %v401
    %v466 = vunpack.c.l.b16 %v402
    %v467 = vunpack.c.l.b16 %v403
    %v468 = vunpack.c.l.b16 %v404
    %v469 = vunpack.c.l.b16 %v405
    %v470 = vunpack.c.l.b16 %v406
    %v471 = vunpack.c.l.b16 %v407
    %v472 = vunpack.c.l.b16 %v408
    %v473 = vunpack.c.l.b16 %v409
    %v474 = vunpack.c.l.b16 %v410
    %v475 = vunpack.c.l.b16 %v411
    %v476 = vunpack.c.l.b16 %v412
    %v477 = vunpack.c.l.b16 %v413
    %v478 = vunpack.c.l.b16 %v414
    %v479 = vunpack.c.l.b16 %v415
    %v480 = vunpack.c.l.b16 %v416
    %v481 = vunpack.c.l.b16 %v417
    %v482 = vunpack.c.l.b16 %v418
    %v483 = vunpack.c.l.b16 %v419
    %v484 = vunpack.c.l.b16 %v420
    %v485 = vunpack.c.l.b16 %v421
    %v486 = vunpack.c.l.b16 %v422
    %v487 = vunpack.c.l.b16 %v423
    %v488 = vunpack.c.l.b16 %v424
    %v489 = vunpack.c.l.b16 %v425
    %v490 = vunpack.c.l.b16 %v426
    %v491 = vunpack.c.l.b16 %v427
    %v492 = vunpack.c.l.b16 %v428
    %v493 = vpack.c.b16 %v462, %v461
    %v494 = vpack.c.b16 %v464, %v463
    %v495 = vpack.c.b16 %v466, %v465
    %v496 = vpack.c.b16 %v468, %v467
    %v497 = vpack.c.b16 %v470, %v469
    %v498 = vpack.c.b16 %v472, %v471
    %v499 = vpack.c.b16 %v474, %v473
    %v500 = vpack.c.b16 %v476, %v475
    %v501 = vpack.c.b16 %v478, %v477
    %v502 = vpack.c.b16 %v480, %v479
    %v503 = vpack.c.b16 %v482, %v481
    %v504 = vpack.c.b16 %v484, %v483
    %v505 = vpack.c.b16 %v486, %v485
    %v506 = vpack.c.b16 %v488, %v487
    %v507 = vpack.c.b16 %v490, %v489
    %v508 = vpack.c.b16 %v492, %v491
    %525 = vmatprep.subr.bf16.mxu0 0
    %526 = vmatpush1.bf16.msra.mxu0 %v493
    %527 = vmatprep.subr.bf16.mxu0 0
    %528 = vmatpush1.bf16.msra.mxu0 %v494
    %529 = vmatprep.subr.bf16.mxu0 0
    %530 = vmatpush1.bf16.msra.mxu0 %v495
    %531 = vmatprep.subr.bf16.mxu0 0
    %532 = vmatpush1.bf16.msra.mxu0 %v496
    %533 = vmatprep.subr.bf16.mxu0 0
    %534 = vmatpush1.bf16.msra.mxu0 %v497
    %535 = vmatprep.subr.bf16.mxu0 0
    %536 = vmatpush1.bf16.msra.mxu0 %v498
    %537 = vmatprep.subr.bf16.mxu0 0
    %538 = vmatpush1.bf16.msra.mxu0 %v499
    %539 = vmatprep.subr.bf16.mxu0 0
    %540 = vmatpush1.bf16.msra.mxu0 %v500
    %541 = vmatprep.subr.bf16.mxu0 0
    %542 = vmatpush1.bf16.msra.mxu0 %v501
    %543 = vmatprep.subr.bf16.mxu0 0
    %544 = vmatpush1.bf16.msra.mxu0 %v502
    %545 = vmatprep.subr.bf16.mxu0 0
    %546 = vmatpush1.bf16.msra.mxu0 %v503
    %547 = vmatprep.subr.bf16.mxu0 0
    %548 = vmatpush1.bf16.msra.mxu0 %v504
    %549 = vmatprep.subr.bf16.mxu0 0
    %550 = vmatpush1.bf16.msra.mxu0 %v505
    %551 = vmatprep.subr.bf16.mxu0 0
    %552 = vmatpush1.bf16.msra.mxu0 %v506
    %553 = vmatprep.subr.bf16.mxu0 0
    %554 = vmatpush1.bf16.msra.mxu0 %v507
    %555 = vmatprep.subr.bf16.mxu0 0
    %556 = vmatpush1.bf16.msra.mxu0 %v508
    %557 = vmatprep.mubr.bf16.mxu0 %v396
    %558 = vmatmul.mubr.bf16.gmra.mrb[0].mxu0 %v395
    %v559 = vpop.f32.mrb[0].mxu0
    %v560 = vadd.f32 0.0, %v559
    %v561 = vpop.f32.mrb[0].mxu0
    %v562 = vpop.f32.mrb[0].mxu0
    %v563 = vadd.f32 0.0, %v562
    %v564 = vpop.f32.mrb[0].mxu0
    %565 = vdwg.mxu0
    %v566 = vadd.f32 %v393, %v560
    %v567 = vadd.f32 %v394, %v563
    %568 = vst [vmem:[#allocation2] sm:$0xff] %v566
    %569 = vst [vmem:[#allocation2 + $0x8] sm:$0xff] %v567
    // Predicated region
    $region38: #{tpu_custom_call.1} parent=1 // pred_check
      %p570 = pneg %p74
    $region39: #{tpu_custom_call.1} parent=1 // pred_check_branch
      %572 = sbr.rel (%p570) target = $region41
    $region40: #{tpu_custom_call.1} parent=1 // pred_region
      %v573 = vld [vmem:[#allocation2] sm:$0xff]
      %v574 = vld [vmem:[#allocation2 + $0x8] sm:$0xff]
      %575 = vst [vmem:[#allocation11] sm:$0xff] %v573
      %576 = vst [vmem:[#allocation11 + $0x8] sm:$0xff] %v574
    $region41: #{tpu_custom_call.1} parent=1 // pred_fallthru
      _
    // Predicated region
    $region42: #{tpu_custom_call.1} parent=1 // pred_check
      _
    $region43: #{tpu_custom_call.1} parent=1 // pred_check_branch
      %578 = sbr.rel (0) target = $region45
    $region44: #{tpu_custom_call.1} parent=1 // pred_region
      %s580 = ssub.s32 256, 256
      %581 = vsyncadd [#allocation5], %s580
      %s582 = sshll.u32 [#allocation11], 4
      %s583 = int_to_ptr.vmem [resolvable:$true] %s582
      %588 = dma.vmem_to_hbm [thread:$0]  %s583, 256, %s4, [#allocation5], 128, 128, 8
    $region45: #{tpu_custom_call.1} parent=1 // pred_fallthru
      _
    // Predicated region
    $region46: #{tpu_custom_call.1} parent=1 // pred_check
      _
    $region47: #{tpu_custom_call.1} parent=1 // pred_check_branch
      %590 = sbr.rel (0) target = $region49
    $region48: #{tpu_custom_call.1} parent=1 // pred_region
      %591 = dma.done [#allocation5], 256
    $region49: #{tpu_custom_call.1} parent=1 // pred_fallthru
      _
    %592 = vsyncpa [#allocation4], 1
    %593 = vsyncpa [#allocation7], 1
    %594 = vsyncpa [#allocation10], 1
    %595 = vsyncpa [#allocation5], 1

</llo_original>
